<compile_context>
chip_gen: v6e
topology: v6e:2x2x1
jax: 0.10.0
libtpu: 0.0.40
codegen_flags: <defaults>
</compile_context>

<pallas_src>
import math

import jax
import jax.numpy as jnp
from jax import lax
from jax.experimental import pallas as pl
from jax.experimental.pallas import tpu as pltpu

LANE = 128
_TARGET_LANES = 512            # preferred packed lane width per group
_TARGET_BLOCK_BYTES = 1 << 20  # ~1 MiB of input per grid step
_MAX_GROUPS_PER_BLOCK = 8      # cap on the static in-kernel unroll

SOBEL_X = ((-1.0, 0.0, 1.0), (-2.0, 0.0, 2.0), (-1.0, 0.0, 1.0))
SOBEL_Y = ((-1.0, -2.0, -1.0), (0.0, 0.0, 0.0), (1.0, 2.0, 1.0))


def _make_gcdd_kernel(img_w, gb):
    """Kernel over a (gb, H, L) block where L = B*img_w images packed along lanes."""

    def kernel(u_ref, o_ref):
        H, L = u_ref.shape[-2], u_ref.shape[-1]

        # Boundary masks, computed once per grid step and shared by all gb
        # groups.  `col % img_w` is the intra-image column, so lane-packed
        # images never leak into each other.
        row = lax.broadcasted_iota(jnp.int32, (H, L), 0)
        col = lax.broadcasted_iota(jnp.int32, (H, L), 1) % img_w
        at_top = row == 0
        at_bot = row == H - 1
        at_left = col == 0
        at_right = col == img_w - 1

        # Register-level shifts with zero-padding semantics (XLU roll + VPU select).
        def up(x):      # x[i-1, j], zero at i == 0
            return jnp.where(at_top, 0.0, pltpu.roll(x, shift=1, axis=0))

        def down(x):    # x[i+1, j], zero at i == H-1
            return jnp.where(at_bot, 0.0, pltpu.roll(x, shift=H - 1, axis=0))

        def left(x):    # x[i, j-1], zero at per-image left edge
            return jnp.where(at_left, 0.0, pltpu.roll(x, shift=1, axis=1))

        def right(x):   # x[i, j+1], zero at per-image right edge
            return jnp.where(at_right, 0.0, pltpu.roll(x, shift=L - 1, axis=1))

        # Separable Sobel cross-correlation (padding=1), adds/subs only.
        def vsmooth(h):             # column filter [ 1, 2, 1]
            return up(h) + (h + h) + down(h)

        def vdiff(h):               # column filter [-1, 0, 1]
            return down(h) - up(h)

        def sobel_pair(x):
            """(sobel_x(x), sobel_y(x)) sharing the horizontal shifts of x."""
            xl, xr = left(x), right(x)
            return vsmooth(xr - xl), vdiff(xl + (x + x) + xr)

        def sobel_x(x):
            xl, xr = left(x), right(x)
            return vsmooth(xr - xl)

        def sobel_y(x):
            xl, xr = left(x), right(x)
            return vdiff(xl + (x + x) + xr)

        def process(u):
            ux, uy = sobel_pair(u)        # shared left(u)/right(u)
            uxx, uxy = sobel_pair(ux)     # shared left(ux)/right(ux)
            uyy = sobel_y(uy)

            # Gaussian curvature.  Reciprocal on the EUP (approx) plus one
            # Newton step: relative error ~2^-24, negligible vs the reference.
            d = 1.0 + ux * ux + uy * uy
            dsq = d * d + 1e-6
            r = pl.reciprocal(dsq, approx=True)
            r = r * (2.0 - dsq * r)
            G = (uxx * uyy - uxy * uxy) * r

            # Diffusivity, flux, divergence.  (PyTorch's `theta * u` is dead
            # code in forward() — it never reaches the output.)
            phi = jnp.exp(-jnp.abs(G))
            return u + sobel_x(phi * ux) + sobel_y(phi * uy)

        for g in range(gb):               # gb is a small compile-time constant
            o_ref[g] = process(u_ref[g])

    return kernel


def gcdd_forward(u_nchw, theta=None, *, target_lanes=_TARGET_LANES,
                 target_block_bytes=_TARGET_BLOCK_BYTES):
    """u_nchw: (N, 1, H, W) float32 -> (N, 1, H, W).

    `theta` is accepted for parity with the nn.Module but is unused: the torch
    forward computes `theta * u` and discards it.
    """
    N, C, H, W = u_nchw.shape
    assert C == 1, "GCDDLayer's Sobel conv expects a single channel"
    x = u_nchw.reshape(N, H, W).astype(jnp.float32)

    # ---- lane packing: make the packed width a multiple of 128 for every W ----
    if W % LANE == 0:
        B = 1                                   # already lane-dense: skip pack/unpack
    else:
        m = LANE // math.gcd(W, LANE)           # smallest B with (B*W) % 128 == 0
        cap = max(1, target_lanes // (m * W))   # grow toward the lane target ...
        need = -(-N // m)                       # ... but never past what the batch fills
        B = m * max(1, min(cap, need))
    n_pad = -(-N // B) * B
    if n_pad != N:
        x = jnp.pad(x, ((0, n_pad - N), (0, 0), (0, 0)))
    G = n_pad // B
    L = B * W
    if B == 1:
        xp = x
    else:
        # (n_pad,H,W) -> (G,B,H,W) -> (G,H,B,W) -> (G,H,B*W)
        xp = x.reshape(G, B, H, W).transpose(0, 2, 1, 3).reshape(G, H, L)

    # ---- groups per grid step: amortize per-step overhead, keep grid >= 2 ----
    bytes_per_group = H * L * 4
    if G >= 2:
        gb = max(1, min(target_block_bytes // bytes_per_group, G // 2,
                        _MAX_GROUPS_PER_BLOCK))
    else:
        gb = 1
    G_pad = -(-G // gb) * gb
    if G_pad != G:
        xp = jnp.pad(xp, ((0, G_pad - G), (0, 0), (0, 0)))

    out = pl.pallas_call(
        _make_gcdd_kernel(W, gb),
        out_shape=jax.ShapeDtypeStruct((G_pad, H, L), jnp.float32),
        grid=(G_pad // gb,),
        in_specs=[pl.BlockSpec((gb, H, L), lambda g: (g, 0, 0))],
        out_specs=pl.BlockSpec((gb, H, L), lambda g: (g, 0, 0)),
        compiler_params=pltpu.CompilerParams(
            dimension_semantics=("parallel",),
            # Explicit limit: portable across v5e (16 MiB scoped default),
            # v6e (32 MiB default) and v7x (64 MiB physical VMEM).
            vmem_limit_bytes=48 * 1024 * 1024,
        ),
    )(xp)

    # Unpack lanes back into the batch and drop all zero padding.
    out = out[:G]
    if B == 1:
        res = out
    else:
        res = out.reshape(G, H, B, W).transpose(0, 2, 1, 3).reshape(n_pad, H, W)
    return res[:N].reshape(N, C, H, W)


# ----------------------- pure-JAX reference (for checking) -----------------------
def _conv3x3_ref(x, k):
    H, W = x.shape[1], x.shape[2]
    xp = jnp.pad(x, ((0, 0), (1, 1), (1, 1)))
    out = jnp.zeros_like(x)
    for di in range(3):
        for dj in range(3):
            out = out + k[di][dj] * xp[:, di:di + H, dj:dj + W]
    return out


def gcdd_reference(u_nchw, theta):
    N, C, H, W = u_nchw.shape
    x = u_nchw.reshape(N, H, W).astype(jnp.float32)
    ux = _conv3x3_ref(x, SOBEL_X)
    uy = _conv3x3_ref(x, SOBEL_Y)
    uxx = _conv3x3_ref(ux, SOBEL_X)
    uxy = _conv3x3_ref(ux, SOBEL_Y)
    uyy = _conv3x3_ref(uy, SOBEL_Y)
    denom = (1.0 + ux ** 2 + uy ** 2) ** 2
    G = (uxx * uyy - uxy ** 2) / (denom + 1e-6)
    phi = jnp.exp(-jnp.abs(G))
    P = phi * ux
    Q = phi * uy
    div = _conv3x3_ref(P, SOBEL_X) + _conv3x3_ref(Q, SOBEL_Y)
    return (x + div).reshape(N, C, H, W)


if __name__ == "__main__":
    k0, k1, k2 = jax.random.split(jax.random.PRNGKey(0), 3)
    theta = jnp.ones((1,), dtype=jnp.float32)  # nn.Parameter(torch.ones(1))

    # Primary case (matches the module's expected single-channel input).
    N, C, H, W = 2, 1, 16, 16
    u = jax.random.normal(k0, (N, C, H, W), dtype=jnp.float32)
    out = jax.block_until_ready(gcdd_forward(u, theta))
    ref = gcdd_reference(u, theta)
    assert out.shape == (N, C, H, W)
    assert jnp.allclose(out, ref, atol=1e-4, rtol=1e-4), "mismatch vs reference (16x16)"

    # Width that does not divide 128 (gcd-based packing -> L=384) + batch padding.
    u2 = jax.random.normal(k1, (3, 1, 8, 24), dtype=jnp.float32)
    out2 = jax.block_until_ready(gcdd_forward(u2, theta))
    ref2 = gcdd_reference(u2, theta)
    assert jnp.allclose(out2, ref2, atol=1e-4, rtol=1e-4), "mismatch vs reference (8x24)"

    # Multi-group-per-block path (gb > 1) with group padding.
    u3 = jax.random.normal(k2, (26, 1, 8, 16), dtype=jnp.float32)
    out3 = jax.block_until_ready(gcdd_forward(u3, theta, target_lanes=128))
    ref3 = gcdd_reference(u3, theta)
    assert jnp.allclose(out3, ref3, atol=1e-4, rtol=1e-4), "mismatch vs reference (8x16 batched)"

    print("KERNEL_OK")
</pallas_src>

<mosaic_0001>
module attributes {stable_mosaic.version = 11 : i64} {
  func.func @kernel(%arg0: i32, %arg1: memref<1x16x128xf32, #tpu.memory_space<vmem>>, %arg2: memref<1x16x128xf32, #tpu.memory_space<vmem>>) attributes {dimension_semantics = [#tpu.dimension_semantics<parallel>], iteration_bounds = array<i64: 1>, scalar_prefetch = 0 : i64, scratch_operands = 0 : i64, tpu.core_type = #tpu.core_type<tc>, window_params = [{transform_indices = @transform_0, window_bounds = array<i64: 1, 16, 128>}, {transform_indices = @transform_1, window_bounds = array<i64: 1, 16, 128>}]} {
    %0 = tpu.iota {dimensions = array<i32: 0>} : vector<16x128xi32>
    %1 = tpu.iota {dimensions = array<i32: 1>} : vector<16x128xi32>
    %c16_i32 = arith.constant 16 : i32
    %c0_i32 = arith.constant 0 : i32
    %2 = arith.cmpi eq, %c16_i32, %c0_i32 : i32
    %c1_i32 = arith.constant 1 : i32
    %3 = arith.select %2, %c1_i32, %c16_i32 : i32
    %4 = vector.broadcast %3 : i32 to vector<16x128xi32>
    %5 = arith.remsi %1, %4 : vector<16x128xi32>
    %c0_i32_0 = arith.constant 0 : i32
    %6 = vector.broadcast %c0_i32_0 : i32 to vector<16x128xi32>
    %7 = arith.cmpi ne, %5, %6 : vector<16x128xi32>
    %c0_i32_1 = arith.constant 0 : i32
    %8 = vector.broadcast %c0_i32_1 : i32 to vector<16x128xi32>
    %9 = arith.cmpi slt, %5, %8 : vector<16x128xi32>
    %c0_i32_2 = arith.constant 0 : i32
    %10 = arith.cmpi slt, %3, %c0_i32_2 : i32
    %11 = vector.broadcast %10 : i1 to vector<16x128xi1>
    %12 = vector.broadcast %11 : vector<16x128xi1> to vector<16x128xi1>
    %13 = arith.xori %9, %12 : vector<16x128xi1>
    %14 = arith.andi %13, %7 : vector<16x128xi1>
    %15 = vector.broadcast %3 : i32 to vector<16x128xi32>
    %16 = arith.addi %5, %15 : vector<16x128xi32>
    %17 = arith.select %14, %16, %5 : vector<16x128xi1>, vector<16x128xi32>
    %c0_i32_3 = arith.constant 0 : i32
    %18 = vector.broadcast %c0_i32_3 : i32 to vector<16x128xi32>
    %19 = arith.cmpi eq, %0, %18 : vector<16x128xi32>
    %c15_i32 = arith.constant 15 : i32
    %20 = vector.broadcast %c15_i32 : i32 to vector<16x128xi32>
    %21 = arith.cmpi eq, %0, %20 : vector<16x128xi32>
    %c0_i32_4 = arith.constant 0 : i32
    %22 = vector.broadcast %c0_i32_4 : i32 to vector<16x128xi32>
    %23 = arith.cmpi eq, %17, %22 : vector<16x128xi32>
    %c15_i32_5 = arith.constant 15 : i32
    %24 = vector.broadcast %c15_i32_5 : i32 to vector<16x128xi32>
    %25 = arith.cmpi eq, %17, %24 : vector<16x128xi32>
    %c0 = arith.constant 0 : index
    %c0_6 = arith.constant 0 : index
    %c0_7 = arith.constant 0 : index
    %26 = vector.load %arg1[%c0, %c0_6, %c0_7] : memref<1x16x128xf32, #tpu.memory_space<vmem>>, vector<1x16x128xf32>
    %27 = vector.shape_cast %26 : vector<1x16x128xf32> to vector<16x128xf32>
    %c1_i32_8 = arith.constant 1 : i32
    %28 = tpu.dynamic_rotate %27 by %c1_i32_8 dim 1 : vector<16x128xf32>, i32 -> vector<16x128xf32>
    %cst = arith.constant 0.000000e+00 : f32
    %29 = vector.broadcast %cst : f32 to vector<16x128xf32>
    %30 = arith.select %23, %29, %28 : vector<16x128xi1>, vector<16x128xf32>
    %c127_i32 = arith.constant 127 : i32
    %31 = tpu.dynamic_rotate %27 by %c127_i32 dim 1 : vector<16x128xf32>, i32 -> vector<16x128xf32>
    %cst_9 = arith.constant 0.000000e+00 : f32
    %32 = vector.broadcast %cst_9 : f32 to vector<16x128xf32>
    %33 = arith.select %25, %32, %31 : vector<16x128xi1>, vector<16x128xf32>
    %34 = arith.subf %33, %30 : vector<16x128xf32>
    %c1_i32_10 = arith.constant 1 : i32
    %35 = tpu.dynamic_rotate %34 by %c1_i32_10 dim 0 : vector<16x128xf32>, i32 -> vector<16x128xf32>
    %cst_11 = arith.constant 0.000000e+00 : f32
    %36 = vector.broadcast %cst_11 : f32 to vector<16x128xf32>
    %37 = arith.select %19, %36, %35 : vector<16x128xi1>, vector<16x128xf32>
    %38 = arith.addf %34, %34 : vector<16x128xf32>
    %39 = arith.addf %37, %38 : vector<16x128xf32>
    %c15_i32_12 = arith.constant 15 : i32
    %40 = tpu.dynamic_rotate %34 by %c15_i32_12 dim 0 : vector<16x128xf32>, i32 -> vector<16x128xf32>
    %cst_13 = arith.constant 0.000000e+00 : f32
    %41 = vector.broadcast %cst_13 : f32 to vector<16x128xf32>
    %42 = arith.select %21, %41, %40 : vector<16x128xi1>, vector<16x128xf32>
    %43 = arith.addf %39, %42 : vector<16x128xf32>
    %44 = arith.addf %27, %27 : vector<16x128xf32>
    %45 = arith.addf %30, %44 : vector<16x128xf32>
    %46 = arith.addf %45, %33 : vector<16x128xf32>
    %c15_i32_14 = arith.constant 15 : i32
    %47 = tpu.dynamic_rotate %46 by %c15_i32_14 dim 0 : vector<16x128xf32>, i32 -> vector<16x128xf32>
    %cst_15 = arith.constant 0.000000e+00 : f32
    %48 = vector.broadcast %cst_15 : f32 to vector<16x128xf32>
    %49 = arith.select %21, %48, %47 : vector<16x128xi1>, vector<16x128xf32>
    %c1_i32_16 = arith.constant 1 : i32
    %50 = tpu.dynamic_rotate %46 by %c1_i32_16 dim 0 : vector<16x128xf32>, i32 -> vector<16x128xf32>
    %cst_17 = arith.constant 0.000000e+00 : f32
    %51 = vector.broadcast %cst_17 : f32 to vector<16x128xf32>
    %52 = arith.select %19, %51, %50 : vector<16x128xi1>, vector<16x128xf32>
    %53 = arith.subf %49, %52 : vector<16x128xf32>
    %c1_i32_18 = arith.constant 1 : i32
    %54 = tpu.dynamic_rotate %43 by %c1_i32_18 dim 1 : vector<16x128xf32>, i32 -> vector<16x128xf32>
    %cst_19 = arith.constant 0.000000e+00 : f32
    %55 = vector.broadcast %cst_19 : f32 to vector<16x128xf32>
    %56 = arith.select %23, %55, %54 : vector<16x128xi1>, vector<16x128xf32>
    %c127_i32_20 = arith.constant 127 : i32
    %57 = tpu.dynamic_rotate %43 by %c127_i32_20 dim 1 : vector<16x128xf32>, i32 -> vector<16x128xf32>
    %cst_21 = arith.constant 0.000000e+00 : f32
    %58 = vector.broadcast %cst_21 : f32 to vector<16x128xf32>
    %59 = arith.select %25, %58, %57 : vector<16x128xi1>, vector<16x128xf32>
    %60 = arith.subf %59, %56 : vector<16x128xf32>
    %c1_i32_22 = arith.constant 1 : i32
    %61 = tpu.dynamic_rotate %60 by %c1_i32_22 dim 0 : vector<16x128xf32>, i32 -> vector<16x128xf32>
    %cst_23 = arith.constant 0.000000e+00 : f32
    %62 = vector.broadcast %cst_23 : f32 to vector<16x128xf32>
    %63 = arith.select %19, %62, %61 : vector<16x128xi1>, vector<16x128xf32>
    %64 = arith.addf %60, %60 : vector<16x128xf32>
    %65 = arith.addf %63, %64 : vector<16x128xf32>
    %c15_i32_24 = arith.constant 15 : i32
    %66 = tpu.dynamic_rotate %60 by %c15_i32_24 dim 0 : vector<16x128xf32>, i32 -> vector<16x128xf32>
    %cst_25 = arith.constant 0.000000e+00 : f32
    %67 = vector.broadcast %cst_25 : f32 to vector<16x128xf32>
    %68 = arith.select %21, %67, %66 : vector<16x128xi1>, vector<16x128xf32>
    %69 = arith.addf %65, %68 : vector<16x128xf32>
    %70 = arith.addf %43, %43 : vector<16x128xf32>
    %71 = arith.addf %56, %70 : vector<16x128xf32>
    %72 = arith.addf %71, %59 : vector<16x128xf32>
    %c15_i32_26 = arith.constant 15 : i32
    %73 = tpu.dynamic_rotate %72 by %c15_i32_26 dim 0 : vector<16x128xf32>, i32 -> vector<16x128xf32>
    %cst_27 = arith.constant 0.000000e+00 : f32
    %74 = vector.broadcast %cst_27 : f32 to vector<16x128xf32>
    %75 = arith.select %21, %74, %73 : vector<16x128xi1>, vector<16x128xf32>
    %c1_i32_28 = arith.constant 1 : i32
    %76 = tpu.dynamic_rotate %72 by %c1_i32_28 dim 0 : vector<16x128xf32>, i32 -> vector<16x128xf32>
    %cst_29 = arith.constant 0.000000e+00 : f32
    %77 = vector.broadcast %cst_29 : f32 to vector<16x128xf32>
    %78 = arith.select %19, %77, %76 : vector<16x128xi1>, vector<16x128xf32>
    %79 = arith.subf %75, %78 : vector<16x128xf32>
    %c1_i32_30 = arith.constant 1 : i32
    %80 = tpu.dynamic_rotate %53 by %c1_i32_30 dim 1 : vector<16x128xf32>, i32 -> vector<16x128xf32>
    %cst_31 = arith.constant 0.000000e+00 : f32
    %81 = vector.broadcast %cst_31 : f32 to vector<16x128xf32>
    %82 = arith.select %23, %81, %80 : vector<16x128xi1>, vector<16x128xf32>
    %c127_i32_32 = arith.constant 127 : i32
    %83 = tpu.dynamic_rotate %53 by %c127_i32_32 dim 1 : vector<16x128xf32>, i32 -> vector<16x128xf32>
    %cst_33 = arith.constant 0.000000e+00 : f32
    %84 = vector.broadcast %cst_33 : f32 to vector<16x128xf32>
    %85 = arith.select %25, %84, %83 : vector<16x128xi1>, vector<16x128xf32>
    %86 = arith.addf %53, %53 : vector<16x128xf32>
    %87 = arith.addf %82, %86 : vector<16x128xf32>
    %88 = arith.addf %87, %85 : vector<16x128xf32>
    %c15_i32_34 = arith.constant 15 : i32
    %89 = tpu.dynamic_rotate %88 by %c15_i32_34 dim 0 : vector<16x128xf32>, i32 -> vector<16x128xf32>
    %cst_35 = arith.constant 0.000000e+00 : f32
    %90 = vector.broadcast %cst_35 : f32 to vector<16x128xf32>
    %91 = arith.select %21, %90, %89 : vector<16x128xi1>, vector<16x128xf32>
    %c1_i32_36 = arith.constant 1 : i32
    %92 = tpu.dynamic_rotate %88 by %c1_i32_36 dim 0 : vector<16x128xf32>, i32 -> vector<16x128xf32>
    %cst_37 = arith.constant 0.000000e+00 : f32
    %93 = vector.broadcast %cst_37 : f32 to vector<16x128xf32>
    %94 = arith.select %19, %93, %92 : vector<16x128xi1>, vector<16x128xf32>
    %95 = arith.subf %91, %94 : vector<16x128xf32>
    %96 = arith.mulf %43, %43 : vector<16x128xf32>
    %cst_38 = arith.constant 1.000000e+00 : f32
    %97 = vector.broadcast %cst_38 : f32 to vector<16x128xf32>
    %98 = arith.addf %97, %96 : vector<16x128xf32>
    %99 = arith.mulf %53, %53 : vector<16x128xf32>
    %100 = arith.addf %98, %99 : vector<16x128xf32>
    %101 = arith.mulf %100, %100 : vector<16x128xf32>
    %cst_39 = arith.constant 9.99999997E-7 : f32
    %102 = vector.broadcast %cst_39 : f32 to vector<16x128xf32>
    %103 = arith.addf %101, %102 : vector<16x128xf32>
    %104 = tpu.reciprocal %103 {approx = true} : vector<16x128xf32> -> vector<16x128xf32>
    %105 = arith.mulf %103, %104 : vector<16x128xf32>
    %cst_40 = arith.constant 2.000000e+00 : f32
    %106 = vector.broadcast %cst_40 : f32 to vector<16x128xf32>
    %107 = arith.subf %106, %105 : vector<16x128xf32>
    %108 = arith.mulf %104, %107 : vector<16x128xf32>
    %109 = arith.mulf %69, %95 : vector<16x128xf32>
    %110 = arith.mulf %79, %79 : vector<16x128xf32>
    %111 = arith.subf %109, %110 : vector<16x128xf32>
    %112 = arith.mulf %111, %108 : vector<16x128xf32>
    %113 = math.absf %112 : vector<16x128xf32>
    %cst_41 = arith.constant 0.000000e+00 : f32
    %114 = vector.broadcast %cst_41 : f32 to vector<16x128xf32>
    %115 = arith.subf %114, %113 : vector<16x128xf32>
    %116 = math.exp %115 : vector<16x128xf32>
    %117 = arith.mulf %116, %43 : vector<16x128xf32>
    %c1_i32_42 = arith.constant 1 : i32
    %118 = tpu.dynamic_rotate %117 by %c1_i32_42 dim 1 : vector<16x128xf32>, i32 -> vector<16x128xf32>
    %cst_43 = arith.constant 0.000000e+00 : f32
    %119 = vector.broadcast %cst_43 : f32 to vector<16x128xf32>
    %120 = arith.select %23, %119, %118 : vector<16x128xi1>, vector<16x128xf32>
    %c127_i32_44 = arith.constant 127 : i32
    %121 = tpu.dynamic_rotate %117 by %c127_i32_44 dim 1 : vector<16x128xf32>, i32 -> vector<16x128xf32>
    %cst_45 = arith.constant 0.000000e+00 : f32
    %122 = vector.broadcast %cst_45 : f32 to vector<16x128xf32>
    %123 = arith.select %25, %122, %121 : vector<16x128xi1>, vector<16x128xf32>
    %124 = arith.subf %123, %120 : vector<16x128xf32>
    %c1_i32_46 = arith.constant 1 : i32
    %125 = tpu.dynamic_rotate %124 by %c1_i32_46 dim 0 : vector<16x128xf32>, i32 -> vector<16x128xf32>
    %cst_47 = arith.constant 0.000000e+00 : f32
    %126 = vector.broadcast %cst_47 : f32 to vector<16x128xf32>
    %127 = arith.select %19, %126, %125 : vector<16x128xi1>, vector<16x128xf32>
    %128 = arith.addf %124, %124 : vector<16x128xf32>
    %129 = arith.addf %127, %128 : vector<16x128xf32>
    %c15_i32_48 = arith.constant 15 : i32
    %130 = tpu.dynamic_rotate %124 by %c15_i32_48 dim 0 : vector<16x128xf32>, i32 -> vector<16x128xf32>
    %cst_49 = arith.constant 0.000000e+00 : f32
    %131 = vector.broadcast %cst_49 : f32 to vector<16x128xf32>
    %132 = arith.select %21, %131, %130 : vector<16x128xi1>, vector<16x128xf32>
    %133 = arith.addf %129, %132 : vector<16x128xf32>
    %134 = arith.addf %27, %133 : vector<16x128xf32>
    %135 = arith.mulf %116, %53 : vector<16x128xf32>
    %c1_i32_50 = arith.constant 1 : i32
    %136 = tpu.dynamic_rotate %135 by %c1_i32_50 dim 1 : vector<16x128xf32>, i32 -> vector<16x128xf32>
    %cst_51 = arith.constant 0.000000e+00 : f32
    %137 = vector.broadcast %cst_51 : f32 to vector<16x128xf32>
    %138 = arith.select %23, %137, %136 : vector<16x128xi1>, vector<16x128xf32>
    %c127_i32_52 = arith.constant 127 : i32
    %139 = tpu.dynamic_rotate %135 by %c127_i32_52 dim 1 : vector<16x128xf32>, i32 -> vector<16x128xf32>
    %cst_53 = arith.constant 0.000000e+00 : f32
    %140 = vector.broadcast %cst_53 : f32 to vector<16x128xf32>
    %141 = arith.select %25, %140, %139 : vector<16x128xi1>, vector<16x128xf32>
    %142 = arith.addf %135, %135 : vector<16x128xf32>
    %143 = arith.addf %138, %142 : vector<16x128xf32>
    %144 = arith.addf %143, %141 : vector<16x128xf32>
    %c15_i32_54 = arith.constant 15 : i32
    %145 = tpu.dynamic_rotate %144 by %c15_i32_54 dim 0 : vector<16x128xf32>, i32 -> vector<16x128xf32>
    %cst_55 = arith.constant 0.000000e+00 : f32
    %146 = vector.broadcast %cst_55 : f32 to vector<16x128xf32>
    %147 = arith.select %21, %146, %145 : vector<16x128xi1>, vector<16x128xf32>
    %c1_i32_56 = arith.constant 1 : i32
    %148 = tpu.dynamic_rotate %144 by %c1_i32_56 dim 0 : vector<16x128xf32>, i32 -> vector<16x128xf32>
    %cst_57 = arith.constant 0.000000e+00 : f32
    %149 = vector.broadcast %cst_57 : f32 to vector<16x128xf32>
    %150 = arith.select %19, %149, %148 : vector<16x128xi1>, vector<16x128xf32>
    %151 = arith.subf %147, %150 : vector<16x128xf32>
    %152 = arith.addf %134, %151 : vector<16x128xf32>
    %c0_58 = arith.constant 0 : index
    %c0_59 = arith.constant 0 : index
    %c0_60 = arith.constant 0 : index
    %153 = vector.load %arg2[%c0_58, %c0_59, %c0_60] : memref<1x16x128xf32, #tpu.memory_space<vmem>>, vector<1x16x128xf32>
    %154 = vector.shape_cast %153 : vector<1x16x128xf32> to vector<16x128xf32>
    %155 = vector.shape_cast %152 : vector<16x128xf32> to vector<1x16x128xf32>
    tpu.vector_store %arg2[%c0_58, %c0_59, %c0_60], %155 {strides = array<i32>} : memref<1x16x128xf32, #tpu.memory_space<vmem>>, vector<1x16x128xf32>,
    return
  }
  func.func @transform_0(%arg0: i32) -> (i32, i32, i32) {
    %c0_i32 = arith.constant 0 : i32
    %c0_i32_0 = arith.constant 0 : i32
    %c0_i32_1 = arith.constant 0 : i32
    return %arg0, %c0_i32, %c0_i32_0 : i32, i32, i32
  }
  func.func @transform_1(%arg0: i32) -> (i32, i32, i32) {
    %c0_i32 = arith.constant 0 : i32
    %c0_i32_0 = arith.constant 0 : i32
    %c0_i32_1 = arith.constant 0 : i32
    return %arg0, %c0_i32, %c0_i32_0 : i32, i32, i32
  }
}

</mosaic_0001>

<llo_original>
// kernel: tpu_custom_call.1
$region0: #{tpu_custom_call.1}
  #allocation0 [shape = 'u32[]', space=smem, size = 0x4, offset = 0x4, fixed_abs, tag = 'smem constant byte address 0x4 - core index']
  #allocation1 [shape = 'u32[144,128]{1,0:T(1,128)}', space=vmem, size = 0x12000, scoped, tag = 'internal scratch']
  %s0 = inlined_call_operand.hbm [shape: f32[1,16,128], index: 0, kind: input, shape index: {}]
  %s1 = inlined_call_operand.hbm [shape: f32[1,16,128], index: 1, kind: output, shape index: {}]
  %s2 = sld [smem:[#allocation0]]
  $region18: #{tpu_custom_call.1} parent=0
    _
  %s4 = ssub.s32 1, %s2
  %s5 = scalar_select 0, %s4, %s2
  $region1: #{tpu_custom_call.1} parent=0
    #allocation2 [shape = 'u8[8192]{0}', space=vmem, size = 0x2000, scoped, tag = 'input window, operand 0, single buffered']
    #allocation3 [shape = 's32[1]{0}', space=sflag, size = 0x4, scoped, tag = 'scoped memory for tpu_custom_call.1']
    #allocation4 [shape = 's32[1]{0}', space=sflag, size = 0x4, scoped, tag = 'scoped memory for tpu_custom_call.1']
    #allocation5 [shape = 'u8[8192]{0}', space=vmem, size = 0x2000, scoped, tag = 'output window, operand 0, single buffered']
    %6 = vsyncpa [#allocation3], 0
    %7 = vsyncpa [#allocation4], 0
    // Predicated region
    $region2: #{tpu_custom_call.1} parent=1 // pred_check
      _
    $region3: #{tpu_custom_call.1} parent=1 // pred_check_branch
      %9 = sbr.rel (0) target = $region5
    $region4: #{tpu_custom_call.1} parent=1 // pred_region
      %s11 = ssub.s32 256, 256
      %12 = vsyncadd [#allocation3], %s11
      %s13 = sshll.u32 [#allocation2], 4
      %s14 = int_to_ptr.vmem [resolvable:$true] %s13
      %19 = dma.hbm_to_vmem [thread:$0]  %s0, 256, %s14, [#allocation3], 128, 128, 8
    $region5: #{tpu_custom_call.1} parent=1 // pred_fallthru
      _
    // Predicated region
    $region6: #{tpu_custom_call.1} parent=1 // pred_check
      _
    $region7: #{tpu_custom_call.1} parent=1 // pred_check_branch
      %21 = sbr.rel (0) target = $region9
    $region8: #{tpu_custom_call.1} parent=1 // pred_region
      %22 = dma.done [#allocation3], 256
    $region9: #{tpu_custom_call.1} parent=1 // pred_fallthru
      _
    %v23 = vlaneseq
    %v24 = vshrl.u32 %v23, 7
    %v25 = vadd.s32 %v24, 8
    %v26 = vlaneseq
    %v27 = vand.u32 %v26, 127
    %vm28 = vcmp.lt.s32.totalorder %v27, 0
    %v29 = vsub.s32 0, %v27
    %v30 = vsel %vm28, %v29, %v27
    %v31 = vshrl.u32 %v30, 4
    %v32 = vand.u32 %v30, 15
    %v33 = vsub.s32 0, %v32
    %v34 = vsel %vm28, %v33, %v32
    %vm35 = vcmp.ne.s32.totalorder %v34, 0
    %vm36 = vcmp.lt.s32.totalorder %v34, 0
    %vm37 = vmand %vm36, %vm35
    %v38 = vadd.s32 %v34, 16
    %v39 = vsel %vm37, %v38, %v34
    %vm40 = vcmp.eq.s32.totalorder %v24, 0
    %vm41 = vcmp.eq.s32.totalorder %v25, 0
    %vm42 = vcmp.eq.s32.totalorder %v24, 15
    %vm43 = vcmp.eq.s32.totalorder %v25, 15
    %vm44 = vcmp.eq.s32.totalorder %v39, 0
    %vm45 = vcmp.eq.s32.totalorder %v39, 15
    %v46 = vld [vmem:[#allocation2] sm:$0xff]
    %v47 = vld [vmem:[#allocation2 + $0x8] sm:$0xff]
    %48 = vrot.lane.b32.xlu0 %v46, 1
    %v49 = vpop.permute.xlu0 %48
    %50 = vrot.lane.b32.xlu0 %v47, 1
    %v51 = vpop.permute.xlu0 %50
    %v52 = vsel %vm44, 0.0, %v49
    %v53 = vsel %vm44, 0.0, %v51
    %54 = vrot.lane.b32.xlu0 %v46, 127
    %v55 = vpop.permute.xlu0 %54
    %56 = vrot.lane.b32.xlu0 %v47, 127
    %v57 = vpop.permute.xlu0 %56
    %v58 = vsel %vm45, 0.0, %v55
    %v59 = vsel %vm45, 0.0, %v57
    %v60 = vsub.f32 %v58, %v52
    %v61 = vsub.f32 %v59, %v53
    %v62 = vrot.slane %v60, 7
    %v63 = vrot.slane %v61, 7
    %vm64 = vcmp.lt.s32.totalorder %v24, 1
    %v65 = vsel %vm64, %v62, %v63
    %v66 = vsel %vm64, %v63, %v62
    %v67 = vsel %vm40, 0.0, %v66
    %v68 = vsel %vm41, 0.0, %v65
    %v69 = vadd.f32 %v60, %v60
    %v70 = vadd.f32 %v61, %v61
    %v71 = vadd.f32 %v67, %v69
    %v72 = vadd.f32 %v68, %v70
    %v73 = vrot.slane %v60, 1
    %v74 = vrot.slane %v61, 1
    %vm75 = vcmp.lt.s32.totalorder %v24, 7
    %v76 = vsel %vm75, %v73, %v74
    %v77 = vsel %vm75, %v74, %v73
    %v78 = vsel %vm42, 0.0, %v76
    %v79 = vsel %vm43, 0.0, %v77
    %v80 = vadd.f32 %v71, %v78
    %v81 = vadd.f32 %v72, %v79
    %v82 = vadd.f32 %v46, %v46
    %v83 = vadd.f32 %v47, %v47
    %v84 = vadd.f32 %v52, %v82
    %v85 = vadd.f32 %v53, %v83
    %v86 = vadd.f32 %v84, %v58
    %v87 = vadd.f32 %v85, %v59
    %v88 = vrot.slane %v86, 1
    %v89 = vrot.slane %v87, 1
    %v90 = vsel %vm75, %v88, %v89
    %v91 = vsel %vm75, %v89, %v88
    %v92 = vsel %vm42, 0.0, %v90
    %v93 = vsel %vm43, 0.0, %v91
    %v94 = vrot.slane %v86, 7
    %v95 = vrot.slane %v87, 7
    %v96 = vsel %vm64, %v94, %v95
    %v97 = vsel %vm64, %v95, %v94
    %v98 = vsel %vm40, 0.0, %v97
    %v99 = vsel %vm41, 0.0, %v96
    %v100 = vsub.f32 %v92, %v98
    %v101 = vsub.f32 %v93, %v99
    %102 = vrot.lane.b32.xlu0 %v80, 1
    %v103 = vpop.permute.xlu0 %102
    %104 = vrot.lane.b32.xlu0 %v81, 1
    %v105 = vpop.permute.xlu0 %104
    %v106 = vsel %vm44, 0.0, %v103
    %v107 = vsel %vm44, 0.0, %v105
    %108 = vrot.lane.b32.xlu0 %v80, 127
    %v109 = vpop.permute.xlu0 %108
    %110 = vrot.lane.b32.xlu0 %v81, 127
    %v111 = vpop.permute.xlu0 %110
    %v112 = vsel %vm45, 0.0, %v109
    %v113 = vsel %vm45, 0.0, %v111
    %v114 = vsub.f32 %v112, %v106
    %v115 = vsub.f32 %v113, %v107
    %v116 = vrot.slane %v114, 7
    %v117 = vrot.slane %v115, 7
    %v118 = vsel %vm64, %v116, %v117
    %v119 = vsel %vm64, %v117, %v116
    %v120 = vsel %vm40, 0.0, %v119
    %v121 = vsel %vm41, 0.0, %v118
    %v122 = vadd.f32 %v114, %v114
    %v123 = vadd.f32 %v115, %v115
    %v124 = vadd.f32 %v120, %v122
    %v125 = vadd.f32 %v121, %v123
    %v126 = vrot.slane %v114, 1
    %v127 = vrot.slane %v115, 1
    %v128 = vsel %vm75, %v126, %v127
    %v129 = vsel %vm75, %v127, %v126
    %v130 = vsel %vm42, 0.0, %v128
    %v131 = vsel %vm43, 0.0, %v129
    %v132 = vadd.f32 %v124, %v130
    %v133 = vadd.f32 %v125, %v131
    %v134 = vadd.f32 %v80, %v80
    %v135 = vadd.f32 %v81, %v81
    %v136 = vadd.f32 %v106, %v134
    %v137 = vadd.f32 %v107, %v135
    %v138 = vadd.f32 %v136, %v112
    %v139 = vadd.f32 %v137, %v113
    %v140 = vrot.slane %v138, 1
    %v141 = vrot.slane %v139, 1
    %v142 = vsel %vm75, %v140, %v141
    %v143 = vsel %vm75, %v141, %v140
    %v144 = vsel %vm42, 0.0, %v142
    %v145 = vsel %vm43, 0.0, %v143
    %v146 = vrot.slane %v138, 7
    %v147 = vrot.slane %v139, 7
    %v148 = vsel %vm64, %v146, %v147
    %v149 = vsel %vm64, %v147, %v146
    %v150 = vsel %vm40, 0.0, %v149
    %v151 = vsel %vm41, 0.0, %v148
    %v152 = vsub.f32 %v144, %v150
    %v153 = vsub.f32 %v145, %v151
    %154 = vrot.lane.b32.xlu0 %v100, 1
    %v155 = vpop.permute.xlu0 %154
    %156 = vrot.lane.b32.xlu0 %v101, 1
    %v157 = vpop.permute.xlu0 %156
    %v158 = vsel %vm44, 0.0, %v155
    %v159 = vsel %vm44, 0.0, %v157
    %160 = vrot.lane.b32.xlu0 %v100, 127
    %v161 = vpop.permute.xlu0 %160
    %162 = vrot.lane.b32.xlu0 %v101, 127
    %v163 = vpop.permute.xlu0 %162
    %v164 = vsel %vm45, 0.0, %v161
    %v165 = vsel %vm45, 0.0, %v163
    %v166 = vadd.f32 %v100, %v100
    %v167 = vadd.f32 %v101, %v101
    %v168 = vadd.f32 %v158, %v166
    %v169 = vadd.f32 %v159, %v167
    %v170 = vadd.f32 %v168, %v164
    %v171 = vadd.f32 %v169, %v165
    %v172 = vrot.slane %v170, 1
    %v173 = vrot.slane %v171, 1
    %v174 = vsel %vm75, %v172, %v173
    %v175 = vsel %vm75, %v173, %v172
    %v176 = vsel %vm42, 0.0, %v174
    %v177 = vsel %vm43, 0.0, %v175
    %v178 = vrot.slane %v170, 7
    %v179 = vrot.slane %v171, 7
    %v180 = vsel %vm64, %v178, %v179
    %v181 = vsel %vm64, %v179, %v178
    %v182 = vsel %vm40, 0.0, %v181
    %v183 = vsel %vm41, 0.0, %v180
    %v184 = vsub.f32 %v176, %v182
    %v185 = vsub.f32 %v177, %v183
    %v186 = vmul.f32 %v80, %v80
    %v187 = vmul.f32 %v81, %v81
    %v188 = vadd.f32 %v186, 1.0
    %v189 = vadd.f32 %v187, 1.0
    %v190 = vmul.f32 %v100, %v100
    %v191 = vmul.f32 %v101, %v101
    %v192 = vadd.f32 %v188, %v190
    %v193 = vadd.f32 %v189, %v191
    %v194 = vmul.f32 %v192, %v192
    %v195 = vmul.f32 %v193, %v193
    %v196 = vadd.f32 %v194, 1e-06
    %v197 = vadd.f32 %v195, 1e-06
    %v198 = vrcp.pop %v196
    %v199 = vrcp.pop %v197
    %v200 = vmul.f32 %v196, %v198
    %v201 = vmul.f32 %v197, %v199
    %v202 = vsub.f32 2.0, %v200
    %v203 = vsub.f32 2.0, %v201
    %v204 = vmul.f32 %v198, %v202
    %v205 = vmul.f32 %v199, %v203
    %v206 = vmul.f32 %v132, %v184
    %v207 = vmul.f32 %v133, %v185
    %v208 = vmul.f32 %v152, %v152
    %v209 = vmul.f32 %v153, %v153
    %v210 = vsub.f32 %v206, %v208
    %v211 = vsub.f32 %v207, %v209
    %v212 = vmul.f32 %v210, %v204
    %v213 = vmul.f32 %v211, %v205
    %v214 = vand.u32 2147483647, %v212
    %v215 = vand.u32 2147483647, %v213
    %v216 = vsub.f32 0.0, %v214
    %v217 = vsub.f32 0.0, %v215
    %v218 = vmul.f32 %v216, 1.442695
    %v219 = vpow.pop %v218
    %v220 = vmul.f32 %v217, 1.442695
    %v221 = vpow.pop %v220
    %v222 = vmul.f32 %v219, %v80
    %v223 = vmul.f32 %v221, %v81
    %224 = vrot.lane.b32.xlu0 %v222, 1
    %v225 = vpop.permute.xlu0 %224
    %226 = vrot.lane.b32.xlu0 %v223, 1
    %v227 = vpop.permute.xlu0 %226
    %v228 = vsel %vm44, 0.0, %v225
    %v229 = vsel %vm44, 0.0, %v227
    %230 = vrot.lane.b32.xlu0 %v222, 127
    %v231 = vpop.permute.xlu0 %230
    %232 = vrot.lane.b32.xlu0 %v223, 127
    %v233 = vpop.permute.xlu0 %232
    %v234 = vsel %vm45, 0.0, %v231
    %v235 = vsel %vm45, 0.0, %v233
    %v236 = vsub.f32 %v234, %v228
    %v237 = vsub.f32 %v235, %v229
    %v238 = vrot.slane %v236, 7
    %v239 = vrot.slane %v237, 7
    %v240 = vsel %vm64, %v238, %v239
    %v241 = vsel %vm64, %v239, %v238
    %v242 = vsel %vm40, 0.0, %v241
    %v243 = vsel %vm41, 0.0, %v240
    %v244 = vadd.f32 %v236, %v236
    %v245 = vadd.f32 %v237, %v237
    %v246 = vadd.f32 %v242, %v244
    %v247 = vadd.f32 %v243, %v245
    %v248 = vrot.slane %v236, 1
    %v249 = vrot.slane %v237, 1
    %v250 = vsel %vm75, %v248, %v249
    %v251 = vsel %vm75, %v249, %v248
    %v252 = vsel %vm42, 0.0, %v250
    %v253 = vsel %vm43, 0.0, %v251
    %v254 = vadd.f32 %v246, %v252
    %v255 = vadd.f32 %v247, %v253
    %v256 = vadd.f32 %v46, %v254
    %v257 = vadd.f32 %v47, %v255
    %v258 = vmul.f32 %v219, %v100
    %v259 = vmul.f32 %v221, %v101
    %260 = vrot.lane.b32.xlu0 %v258, 1
    %v261 = vpop.permute.xlu0 %260
    %262 = vrot.lane.b32.xlu0 %v259, 1
    %v263 = vpop.permute.xlu0 %262
    %v264 = vsel %vm44, 0.0, %v261
    %v265 = vsel %vm44, 0.0, %v263
    %266 = vrot.lane.b32.xlu0 %v258, 127
    %v267 = vpop.permute.xlu0 %266
    %268 = vrot.lane.b32.xlu0 %v259, 127
    %v269 = vpop.permute.xlu0 %268
    %v270 = vsel %vm45, 0.0, %v267
    %v271 = vsel %vm45, 0.0, %v269
    %v272 = vadd.f32 %v258, %v258
    %v273 = vadd.f32 %v259, %v259
    %v274 = vadd.f32 %v264, %v272
    %v275 = vadd.f32 %v265, %v273
    %v276 = vadd.f32 %v274, %v270
    %v277 = vadd.f32 %v275, %v271
    %v278 = vrot.slane %v276, 1
    %v279 = vrot.slane %v277, 1
    %v280 = vsel %vm75, %v278, %v279
    %v281 = vsel %vm75, %v279, %v278
    %v282 = vsel %vm42, 0.0, %v280
    %v283 = vsel %vm43, 0.0, %v281
    %v284 = vrot.slane %v276, 7
    %v285 = vrot.slane %v277, 7
    %v286 = vsel %vm64, %v284, %v285
    %v287 = vsel %vm64, %v285, %v284
    %v288 = vsel %vm40, 0.0, %v287
    %v289 = vsel %vm41, 0.0, %v286
    %v290 = vsub.f32 %v282, %v288
    %v291 = vsub.f32 %v283, %v289
    %v292 = vadd.f32 %v256, %v290
    %v293 = vadd.f32 %v257, %v291
    %294 = vst [vmem:[#allocation5] sm:$0xff] %v292
    %295 = vst [vmem:[#allocation5 + $0x8] sm:$0xff] %v293
    // Predicated region
    $region10: #{tpu_custom_call.1} parent=1 // pred_check
      _
    $region11: #{tpu_custom_call.1} parent=1 // pred_check_branch
      %297 = sbr.rel (0) target = $region13
    $region12: #{tpu_custom_call.1} parent=1 // pred_region
      %s299 = ssub.s32 256, 256
      %300 = vsyncadd [#allocation4], %s299
      %s301 = sshll.u32 [#allocation5], 4
      %s302 = int_to_ptr.vmem [resolvable:$true] %s301
      %307 = dma.vmem_to_hbm [thread:$0]  %s302, 256, %s1, [#allocation4], 128, 128, 8
    $region13: #{tpu_custom_call.1} parent=1 // pred_fallthru
      _
    // Predicated region
    $region14: #{tpu_custom_call.1} parent=1 // pred_check
      _
    $region15: #{tpu_custom_call.1} parent=1 // pred_check_branch
      %309 = sbr.rel (0) target = $region17
    $region16: #{tpu_custom_call.1} parent=1 // pred_region
      %310 = dma.done [#allocation4], 256
    $region17: #{tpu_custom_call.1} parent=1 // pred_fallthru
      _
    %311 = vsyncpa [#allocation3], 1
    %312 = vsyncpa [#allocation4], 1

</llo_original>
